<compile_context>
chip_gen: v6e
topology: v6e:2x2x1
jax: 0.10.0
libtpu: 0.0.40
codegen_flags: <defaults>
</compile_context>

<pallas_src>
import functools

import jax
import jax.numpy as jnp
import numpy as np
from jax.experimental import pallas as pl
from jax.experimental.pallas import tpu as pltpu


# Step flags in the prefetched schedule.
_ACC = 0        # accumulate into the resident output block
_INIT_ACC = 1   # zero the output block, then accumulate (first k of a pair)
_ZERO = 2       # zero-only write (strictly-lower-triangular output block)
_NOP = 3        # padding step (aliases the core's last block; does nothing)


def _ut_kernel(oi_ref, oj_ref, ai_ref, kk_ref, bj_ref, flag_ref,
               a_ref, b_ref, o_ref, *, steps_per_core):
    c = pl.program_id(0)
    s = pl.program_id(1)
    p = c * steps_per_core + s
    f = flag_ref[p]

    @pl.when(jnp.logical_or(f == _INIT_ACC, f == _ZERO))
    def _():
        o_ref[...] = jnp.zeros_like(o_ref)

    @pl.when(f <= _INIT_ACC)
    def _():
        # Inputs are already upper-triangular -> unmasked MXU dot.
        o_ref[...] += jnp.dot(a_ref[...], b_ref[...],
                              preferred_element_type=jnp.float32)


def _pick_tiles(np_size):
    """Tile sizes (tm, tn, tk) for a 128-aligned problem size."""
    def pick(cands):
        for c in cands:
            if np_size % c == 0:
                return c
        return 128
    tm = pick((512, 256, 128)) if np_size >= 1024 else pick((256, 128))
    # Smaller tk at moderate N reduces wasted FLOPs at the band edges.
    tk = pick((512, 256, 128)) if np_size >= 4096 else pick((256, 128))
    return tm, tm, tk


def _build_schedule(nbi, nbj, nbk, tm, tn, tk):
    """Flat per-core schedule of (output block, reduction block, flag) steps."""
    pairs, lower = [], []
    for i in range(nbi):
        for j in range(nbj):
            if (j + 1) * tn > i * tm:            # block touches the upper triangle
                kmin = (i * tm) // tk
                kmax = min(((j + 1) * tn - 1) // tk, nbk - 1)
                pairs.append((i, j, kmin, kmax))
            else:                                 # strictly below the diagonal
                lower.append((i, j))

    num_items = len(pairs) + len(lower)
    num_cores = 2 if num_items >= 2 else 1        # v7x megacore; harmless on 1-TC chips

    core_items = [[] for _ in range(num_cores)]
    core_cost = [0.0] * num_cores
    # LPT balance of MXU work across cores (matters only on v7x).
    for (i, j, kmin, kmax) in sorted(pairs, key=lambda t: -(t[3] - t[2] + 1)):
        c = min(range(num_cores), key=lambda x: core_cost[x])
        core_items[c].append(("pair", i, j, kmin, kmax))
        core_cost[c] += float(kmax - kmin + 1)
    for (i, j) in lower:
        c = min(range(num_cores), key=lambda x: core_cost[x])
        core_items[c].append(("zero", i, j))
        core_cost[c] += 0.25

    core_steps = []
    for c in range(num_cores):
        steps = []
        for item in core_items[c]:
            if item[0] == "pair":
                _, i, j, kmin, kmax = item
                for k in range(kmin, kmax + 1):
                    steps.append((i, j, i, k, j,
                                  _INIT_ACC if k == kmin else _ACC))
            else:
                _, i, j = item
                prev = steps[-1] if steps else (0, 0, 0, 0, 0, 0)
                # Alias the previous step's input blocks -> no extra input DMA.
                steps.append((i, j, prev[2], prev[3], prev[4], _ZERO))
        assert steps, "every core must own at least one real step"
        core_steps.append(steps)

    H = max(len(s) for s in core_steps)
    sched = np.zeros((num_cores, H, 6), np.int32)
    for c in range(num_cores):
        steps = list(core_steps[c])
        while len(steps) < H:                     # no-op pads: alias own last block
            prev = steps[-1]
            steps.append((prev[0], prev[1], prev[2], prev[3], prev[4], _NOP))
        sched[c] = np.asarray(steps, np.int32)

    flat = sched.reshape(num_cores * H, 6)
    cols = [np.ascontiguousarray(flat[:, t]) for t in range(6)]
    oi, oj, ai, kk, bj, flag = cols
    return num_cores, H, oi, oj, ai, kk, bj, flag


@jax.jit
def upper_triangular_matmul(A, B):
    N = A.shape[0]
    assert A.shape == (N, N) and B.shape == (N, N)
    out_dtype = jnp.result_type(A.dtype, B.dtype)

    # Zero the strictly-lower triangles of the inputs once (fuses with the pad
    # copy under jit); the kernel then needs no masking at all. Inputs keep
    # their native dtype (no forced f32 upcast); accumulation is f32 via
    # preferred_element_type.
    A = jnp.triu(A)
    B = jnp.triu(B)

    Np = ((N + 127) // 128) * 128
    if Np != N:
        A = jnp.pad(A, ((0, Np - N), (0, Np - N)))
        B = jnp.pad(B, ((0, Np - N), (0, Np - N)))

    tm, tn, tk = _pick_tiles(Np)
    nbi, nbj, nbk = Np // tm, Np // tn, Np // tk

    num_cores, H, oi, oj, ai, kk, bj, flag = _build_schedule(
        nbi, nbj, nbk, tm, tn, tk)

    def a_map(c, s, oi_r, oj_r, ai_r, kk_r, bj_r, flag_r):
        p = c * H + s
        return (ai_r[p], kk_r[p])

    def b_map(c, s, oi_r, oj_r, ai_r, kk_r, bj_r, flag_r):
        p = c * H + s
        return (kk_r[p], bj_r[p])

    def o_map(c, s, oi_r, oj_r, ai_r, kk_r, bj_r, flag_r):
        p = c * H + s
        return (oi_r[p], oj_r[p])

    kernel = functools.partial(_ut_kernel, steps_per_core=H)

    C = pl.pallas_call(
        kernel,
        out_shape=jax.ShapeDtypeStruct((Np, Np), jnp.float32),
        grid_spec=pltpu.PrefetchScalarGridSpec(
            num_scalar_prefetch=6,
            grid=(num_cores, H),
            in_specs=[
                pl.BlockSpec((tm, tk), a_map),
                pl.BlockSpec((tk, tn), b_map),
            ],
            out_specs=pl.BlockSpec((tm, tn), o_map),
        ),
        compiler_params=pltpu.CompilerParams(
            dimension_semantics=("parallel", "arbitrary"),
        ),
    )(jnp.asarray(oi), jnp.asarray(oj), jnp.asarray(ai),
      jnp.asarray(kk), jnp.asarray(bj), jnp.asarray(flag), A, B)

    if Np != N:
        C = C[:N, :N]
    return C.astype(out_dtype)


if __name__ == "__main__":
    key = jax.random.PRNGKey(0)
    for N in (200, 256, 512, 640):
        k1, k2 = jax.random.split(jax.random.fold_in(key, N))
        A = jax.random.normal(k1, (N, N), dtype=jnp.float32)
        B = jax.random.normal(k2, (N, N), dtype=jnp.float32)

        C = jax.block_until_ready(upper_triangular_matmul(A, B))

        C_ref = jnp.matmul(jnp.triu(A), jnp.triu(B),
                           precision=jax.lax.Precision.HIGHEST)
        err = float(jnp.max(jnp.abs(C - C_ref)))
        assert jnp.allclose(C, C_ref, atol=1e-2, rtol=1e-3), (
            f"mismatch at N={N}: max abs err {err}")

    print("KERNEL_OK")
</pallas_src>

<mosaic_0001>
module attributes {stable_mosaic.version = 11 : i64} {
  func.func @_ut_kernel(%arg0: i32, %arg1: i32, %arg2: memref<1xi32, #tpu.memory_space<smem>>, %arg3: memref<1xi32, #tpu.memory_space<smem>>, %arg4: memref<1xi32, #tpu.memory_space<smem>>, %arg5: memref<1xi32, #tpu.memory_space<smem>>, %arg6: memref<1xi32, #tpu.memory_space<smem>>, %arg7: memref<1xi32, #tpu.memory_space<smem>>, %arg8: memref<256x256xf32, #tpu.memory_space<vmem>>, %arg9: memref<256x256xf32, #tpu.memory_space<vmem>>, %arg10: memref<256x256xf32, #tpu.memory_space<vmem>>) attributes {dimension_semantics = [#tpu.dimension_semantics<parallel>, #tpu.dimension_semantics<arbitrary>], iteration_bounds = array<i64: 1, 1>, scalar_prefetch = 6 : i64, scratch_operands = 0 : i64, tpu.core_type = #tpu.core_type<tc>, window_params = [{transform_indices = @transform_0, window_bounds = array<i64: 256, 256>}, {transform_indices = @transform_1, window_bounds = array<i64: 256, 256>}, {transform_indices = @transform_2, window_bounds = array<i64: 256, 256>}]} {
    %c1_i32 = arith.constant 1 : i32
    %0 = arith.muli %arg0, %c1_i32 : i32
    %1 = arith.addi %0, %arg1 : i32
    %2 = arith.index_cast %1 : i32 to index
    %3 = memref.load %arg7[%2] : memref<1xi32, #tpu.memory_space<smem>>
    %c1_i32_0 = arith.constant 1 : i32
    %4 = arith.cmpi eq, %3, %c1_i32_0 : i32
    %c2_i32 = arith.constant 2 : i32
    %5 = arith.cmpi eq, %3, %c2_i32 : i32
    %6 = arith.ori %4, %5 : i1
    %7 = arith.extui %6 : i1 to i32
    %c0_i32 = arith.constant 0 : i32
    %8 = arith.cmpi ne, %7, %c0_i32 : i32
    scf.if %8 {
      %cst = arith.constant 0.000000e+00 : f32
      %12 = vector.broadcast %cst : f32 to vector<256x256xf32>
      %c0 = arith.constant 0 : index
      %c0_3 = arith.constant 0 : index
      %13 = vector.load %arg10[%c0, %c0_3] : memref<256x256xf32, #tpu.memory_space<vmem>>, vector<256x256xf32>
      tpu.vector_store %arg10[%c0, %c0_3], %12 {strides = array<i32>} : memref<256x256xf32, #tpu.memory_space<vmem>>, vector<256x256xf32>,
    } else {
    }
    %c1_i32_1 = arith.constant 1 : i32
    %9 = arith.cmpi sle, %3, %c1_i32_1 : i32
    %10 = arith.extui %9 : i1 to i32
    %c0_i32_2 = arith.constant 0 : i32
    %11 = arith.cmpi ne, %10, %c0_i32_2 : i32
    scf.if %11 {
      %c0 = arith.constant 0 : index
      %c0_3 = arith.constant 0 : index
      %12 = vector.load %arg10[%c0, %c0_3] : memref<256x256xf32, #tpu.memory_space<vmem>>, vector<256x256xf32>
      %c0_4 = arith.constant 0 : index
      %c0_5 = arith.constant 0 : index
      %13 = vector.load %arg8[%c0_4, %c0_5] : memref<256x256xf32, #tpu.memory_space<vmem>>, vector<256x256xf32>
      %c0_6 = arith.constant 0 : index
      %c0_7 = arith.constant 0 : index
      %14 = vector.load %arg9[%c0_6, %c0_7] : memref<256x256xf32, #tpu.memory_space<vmem>>, vector<256x256xf32>
      %cst = arith.constant dense<0.000000e+00> : vector<256x256xf32>
      %15 = tpu.matmul %13, %14, %cst {dimension_numbers = #tpu.dot_dimension_numbers<[1], [0], [0], [1], [0, 0, 1, 1], [], []>} : vector<256x256xf32>, vector<256x256xf32>, vector<256x256xf32> -> vector<256x256xf32>
      %16 = arith.addf %12, %15 : vector<256x256xf32>
      %c0_8 = arith.constant 0 : index
      %c0_9 = arith.constant 0 : index
      %17 = vector.load %arg10[%c0_8, %c0_9] : memref<256x256xf32, #tpu.memory_space<vmem>>, vector<256x256xf32>
      tpu.vector_store %arg10[%c0_8, %c0_9], %16 {strides = array<i32>} : memref<256x256xf32, #tpu.memory_space<vmem>>, vector<256x256xf32>,
    } else {
    }
    return
  }
  func.func @transform_0(%arg0: i32, %arg1: i32, %arg2: memref<1xi32, #tpu.memory_space<smem>>, %arg3: memref<1xi32, #tpu.memory_space<smem>>, %arg4: memref<1xi32, #tpu.memory_space<smem>>, %arg5: memref<1xi32, #tpu.memory_space<smem>>, %arg6: memref<1xi32, #tpu.memory_space<smem>>, %arg7: memref<1xi32, #tpu.memory_space<smem>>) -> (i32, i32) {
    %c1_i32 = arith.constant 1 : i32
    %0 = arith.muli %arg0, %c1_i32 : i32
    %1 = arith.addi %0, %arg1 : i32
    %2 = arith.index_cast %1 : i32 to index
    %3 = memref.load %arg4[%2] : memref<1xi32, #tpu.memory_space<smem>>
    %4 = arith.index_cast %1 : i32 to index
    %5 = memref.load %arg5[%4] : memref<1xi32, #tpu.memory_space<smem>>
    %c0_i32 = arith.constant 0 : i32
    return %3, %5 : i32, i32
  }
  func.func @transform_1(%arg0: i32, %arg1: i32, %arg2: memref<1xi32, #tpu.memory_space<smem>>, %arg3: memref<1xi32, #tpu.memory_space<smem>>, %arg4: memref<1xi32, #tpu.memory_space<smem>>, %arg5: memref<1xi32, #tpu.memory_space<smem>>, %arg6: memref<1xi32, #tpu.memory_space<smem>>, %arg7: memref<1xi32, #tpu.memory_space<smem>>) -> (i32, i32) {
    %c1_i32 = arith.constant 1 : i32
    %0 = arith.muli %arg0, %c1_i32 : i32
    %1 = arith.addi %0, %arg1 : i32
    %2 = arith.index_cast %1 : i32 to index
    %3 = memref.load %arg5[%2] : memref<1xi32, #tpu.memory_space<smem>>
    %4 = arith.index_cast %1 : i32 to index
    %5 = memref.load %arg6[%4] : memref<1xi32, #tpu.memory_space<smem>>
    %c0_i32 = arith.constant 0 : i32
    return %3, %5 : i32, i32
  }
  func.func @transform_2(%arg0: i32, %arg1: i32, %arg2: memref<1xi32, #tpu.memory_space<smem>>, %arg3: memref<1xi32, #tpu.memory_space<smem>>, %arg4: memref<1xi32, #tpu.memory_space<smem>>, %arg5: memref<1xi32, #tpu.memory_space<smem>>, %arg6: memref<1xi32, #tpu.memory_space<smem>>, %arg7: memref<1xi32, #tpu.memory_space<smem>>) -> (i32, i32) {
    %c1_i32 = arith.constant 1 : i32
    %0 = arith.muli %arg0, %c1_i32 : i32
    %1 = arith.addi %0, %arg1 : i32
    %2 = arith.index_cast %1 : i32 to index
    %3 = memref.load %arg2[%2] : memref<1xi32, #tpu.memory_space<smem>>
    %4 = arith.index_cast %1 : i32 to index
    %5 = memref.load %arg3[%4] : memref<1xi32, #tpu.memory_space<smem>>
    %c0_i32 = arith.constant 0 : i32
    return %3, %5 : i32, i32
  }
}

</mosaic_0001>

<llo_original>
// kernel: upper_triangular_matmul.1
$region0: #{upper_triangular_matmul.1}
  #allocation0 [shape = 'u32[]', space=smem, size = 0x4, offset = 0x4, fixed_abs, tag = 'smem constant byte address 0x4 - core index']
  #allocation1 [shape = 'u32[144,128]{1,0:T(1,128)}', space=vmem, size = 0x12000, scoped, tag = 'internal scratch']
  #allocation2 [shape = 's32[1]{0}', space=sflag, size = 0x4, scoped, tag = 'scoped memory for upper_triangular_matmul.1']
  #allocation3 [shape = 's32[1]{0:T(128)S(6)}', space=smem, size = 0x200, scoped, tag = 'prefetched SMEM operand 0']
  #allocation4 [shape = 's32[1]{0:T(128)S(6)}', space=smem, size = 0x200, scoped, tag = 'prefetched SMEM operand 1']
  #allocation5 [shape = 's32[1]{0:T(128)S(6)}', space=smem, size = 0x200, scoped, tag = 'prefetched SMEM operand 2']
  #allocation6 [shape = 's32[1]{0:T(128)S(6)}', space=smem, size = 0x200, scoped, tag = 'prefetched SMEM operand 3']
  #allocation7 [shape = 's32[1]{0:T(128)S(6)}', space=smem, size = 0x200, scoped, tag = 'prefetched SMEM operand 4']
  #allocation8 [shape = 's32[1]{0:T(128)S(6)}', space=smem, size = 0x200, scoped, tag = 'prefetched SMEM operand 5']
  %s0 = inlined_call_operand.<no memory space> [shape: s32[1], index: 0, kind: input, shape index: {}, may-alias: {0,1,2,3,4}]
  %s1 = inlined_call_operand.<no memory space> [shape: s32[1], index: 1, kind: input, shape index: {}, may-alias: {0,1,2,3,4}]
  %s2 = inlined_call_operand.<no memory space> [shape: s32[1], index: 2, kind: input, shape index: {}, may-alias: {0,1,2,3,4}]
  %s3 = inlined_call_operand.<no memory space> [shape: s32[1], index: 3, kind: input, shape index: {}, may-alias: {0,1,2,3,4}]
  %s4 = inlined_call_operand.<no memory space> [shape: s32[1], index: 4, kind: input, shape index: {}, may-alias: {0,1,2,3,4}]
  %s5 = inlined_call_operand.<no memory space> [shape: s32[1], index: 5, kind: input, shape index: {}]
  %s6 = inlined_call_operand.vmem [shape: f32[256,256], index: 6, kind: input, shape index: {}]
  %s7 = inlined_call_operand.vmem [shape: f32[256,256], index: 7, kind: input, shape index: {}]
  %s8 = inlined_call_operand.vmem [shape: f32[256,256], index: 8, kind: output, shape index: {}]
  %s9 = sld [smem:[#allocation0]]
  $region26: #{upper_triangular_matmul.1} parent=0
    _
  %s11 = ssub.s32 1, %s9
  %s12 = scalar_select 0, %s11, %s9
  %13 = sst [smem:[#allocation3]] %s0
  %14 = sst [smem:[#allocation4]] %s1
  %15 = sst [smem:[#allocation5]] %s2
  %16 = sst [smem:[#allocation6]] %s3
  %17 = sst [smem:[#allocation7]] %s4
  %18 = sst [smem:[#allocation8]] %s5
  // Predicated region
  $region2: #{upper_triangular_matmul.1} parent=0 // pred_check
    _
  $region3: #{upper_triangular_matmul.1} parent=0 // pred_check_branch
    %20 = sbr.rel (0) target = $region5
  $region4: #{upper_triangular_matmul.1} parent=0 // pred_region
    %s21 = sadd.s32 0, 0
    %s22 = sld [smem:[#allocation5 + %s21]]
    %s23 = sld [smem:[#allocation6 + %s21]]
    %s24 = smul.u32 32, %s22
    %s25 = smul.u32 2, %s23
    %p26 = scmp.lt.s32.totalorder %s24, 31
    %s27 = scalar_select %p26, %s24, 31
    %p28 = scmp.lt.s32.totalorder %s25, 1
    %s29 = scalar_select %p28, %s25, 1
    %s30 = smul.addr %s27, 2
    %s31 = sadd.s32 %s29, %s30
    %s32 = smul.addr %s31, 8
    %s33 = scalar_lea.vmem %s6, %s32
    %s34 = sadd.s32 0, 0
    %s35 = sld [smem:[#allocation5 + %s34]]
    %s36 = sld [smem:[#allocation6 + %s34]]
    %s37 = smul.u32 32, %s35
    %s38 = smul.u32 2, %s36
  $region5: #{upper_triangular_matmul.1} parent=0 // pred_fallthru
    _
  // Predicated region
  $region6: #{upper_triangular_matmul.1} parent=0 // pred_check
    _
  $region7: #{upper_triangular_matmul.1} parent=0 // pred_check_branch
    %40 = sbr.rel (0) target = $region9
  $region8: #{upper_triangular_matmul.1} parent=0 // pred_region
    %s41 = sadd.s32 0, 0
    %s42 = sld [smem:[#allocation6 + %s41]]
    %s43 = sld [smem:[#allocation7 + %s41]]
    %s44 = smul.u32 32, %s42
    %s45 = smul.u32 2, %s43
    %p46 = scmp.lt.s32.totalorder %s44, 31
    %s47 = scalar_select %p46, %s44, 31
    %p48 = scmp.lt.s32.totalorder %s45, 1
    %s49 = scalar_select %p48, %s45, 1
    %s50 = smul.addr %s47, 2
    %s51 = sadd.s32 %s49, %s50
    %s52 = smul.addr %s51, 8
    %s53 = scalar_lea.vmem %s7, %s52
    %s54 = sadd.s32 0, 0
    %s55 = sld [smem:[#allocation6 + %s54]]
    %s56 = sld [smem:[#allocation7 + %s54]]
    %s57 = smul.u32 32, %s55
    %s58 = smul.u32 2, %s56
  $region9: #{upper_triangular_matmul.1} parent=0 // pred_fallthru
    _
  %s59 = sadd.s32 0, 0
  %s60 = sld [smem:[#allocation5 + %s59]]
  %s61 = sld [smem:[#allocation6 + %s59]]
  %s62 = smul.u32 32, %s60
  %s63 = smul.u32 2, %s61
  %p64 = scmp.lt.s32.totalorder %s62, 31
  %s65 = scalar_select %p64, %s62, 31
  %p66 = scmp.lt.s32.totalorder %s63, 1
  %s67 = scalar_select %p66, %s63, 1
  %s68 = smul.addr %s65, 2
  %s69 = sadd.s32 %s67, %s68
  %s70 = smul.addr %s69, 8
  %s71 = scalar_lea.vmem %s6, %s70
  %s72 = sadd.s32 0, 0
  %s73 = sld [smem:[#allocation6 + %s72]]
  %s74 = sld [smem:[#allocation7 + %s72]]
  %s75 = smul.u32 32, %s73
  %s76 = smul.u32 2, %s74
  %p77 = scmp.lt.s32.totalorder %s75, 31
  %s78 = scalar_select %p77, %s75, 31
  %p79 = scmp.lt.s32.totalorder %s76, 1
  %s80 = scalar_select %p79, %s76, 1
  %s81 = smul.addr %s78, 2
  %s82 = sadd.s32 %s80, %s81
  %s83 = smul.addr %s82, 8
  %s84 = scalar_lea.vmem %s7, %s83
  %s85 = sadd.s32 0, 0
  %s86 = sld [smem:[#allocation3 + %s85]]
  %s87 = sld [smem:[#allocation4 + %s85]]
  %s88 = smul.u32 32, %s86
  %s89 = smul.u32 2, %s87
  %p90 = scmp.lt.s32.totalorder %s88, 31
  %s91 = scalar_select %p90, %s88, 31
  %p92 = scmp.lt.s32.totalorder %s89, 1
  %s93 = scalar_select %p92, %s89, 1
  %s94 = smul.addr %s91, 2
  %s95 = sadd.s32 %s93, %s94
  %s96 = smul.addr %s95, 8
  %s97 = scalar_lea.vmem %s8, %s96
  %s98 = sadd.s32 0, 0
  %s99 = sld [smem:[#allocation5 + %s98]]
  %s100 = sld [smem:[#allocation6 + %s98]]
  %s101 = smul.u32 32, %s99
  %s102 = smul.u32 2, %s100
  %p103 = scmp.lt.s32.totalorder %s101, 31
  %s104 = scalar_select %p103, %s101, 31
  %p105 = scmp.lt.s32.totalorder %s102, 1
  %s106 = scalar_select %p105, %s102, 1
  %s107 = smul.addr %s104, 2
  %s108 = sadd.s32 %s106, %s107
  %s109 = smul.addr %s108, 8
  %s110 = scalar_lea.vmem %s6, %s109
  %s111 = sadd.s32 0, 0
  %s112 = sld [smem:[#allocation5 + %s111]]
  %s113 = sld [smem:[#allocation6 + %s111]]
  %s114 = smul.u32 32, %s112
  %s115 = smul.u32 2, %s113
  %s116 = sadd.s32 0, 0
  %s117 = sld [smem:[#allocation6 + %s116]]
  %s118 = sld [smem:[#allocation7 + %s116]]
  %s119 = smul.u32 32, %s117
  %s120 = smul.u32 2, %s118
  %p121 = scmp.lt.s32.totalorder %s119, 31
  %s122 = scalar_select %p121, %s119, 31
  %p123 = scmp.lt.s32.totalorder %s120, 1
  %s124 = scalar_select %p123, %s120, 1
  %s125 = smul.addr %s122, 2
  %s126 = sadd.s32 %s124, %s125
  %s127 = smul.addr %s126, 8
  %s128 = scalar_lea.vmem %s7, %s127
  %s129 = sadd.s32 0, 0
  %s130 = sld [smem:[#allocation6 + %s129]]
  %s131 = sld [smem:[#allocation7 + %s129]]
  %s132 = smul.u32 32, %s130
  %s133 = smul.u32 2, %s131
  %s134 = sadd.s32 0, 0
  %s135 = sld [smem:[#allocation3 + %s134]]
  %s136 = sld [smem:[#allocation4 + %s134]]
  %s137 = smul.u32 32, %s135
  %s138 = smul.u32 2, %s136
  %p139 = scmp.lt.s32.totalorder %s137, 31
  %s140 = scalar_select %p139, %s137, 31
  %p141 = scmp.lt.s32.totalorder %s138, 1
  %s142 = scalar_select %p141, %s138, 1
  %s143 = smul.addr %s140, 2
  %s144 = sadd.s32 %s142, %s143
  %s145 = smul.addr %s144, 8
  %s146 = scalar_lea.vmem %s8, %s145
  %s147 = sadd.s32 0, 0
  %s148 = sld [smem:[#allocation3 + %s147]]
  %s149 = sld [smem:[#allocation4 + %s147]]
  %s150 = smul.u32 32, %s148
  %s151 = smul.u32 2, %s149
  %s152 = sadd.s32 0, 0
  %s153 = sld [smem:[#allocation8 + %s152]]
  %p154 = scmp.eq.s32.totalorder %s153, 1
  %p155 = scmp.eq.s32.totalorder %s153, 2
  %p156 = por %p154, %p155
  // Predicated region
  $region10: #{upper_triangular_matmul.1} parent=0 // pred_check
    %p157 = pneg %p156
  $region11: #{upper_triangular_matmul.1} parent=0 // pred_check_branch
    %159 = sbr.rel (%p157) target = $region13
  $region12: #{upper_triangular_matmul.1} parent=0 // pred_region
    %160 = vst [vmem:[%s146] sm:$0xff] 0.0
    %161 = vst [vmem:[%s146 + $0x8] sm:$0xff] 0.0
    %162 = vst [vmem:[%s146 + $0x10] sm:$0xff] 0.0
    %163 = vst [vmem:[%s146 + $0x18] sm:$0xff] 0.0
    %164 = vst [vmem:[%s146 + $0x20] sm:$0xff] 0.0
    %165 = vst [vmem:[%s146 + $0x28] sm:$0xff] 0.0
    %166 = vst [vmem:[%s146 + $0x30] sm:$0xff] 0.0
    %167 = vst [vmem:[%s146 + $0x38] sm:$0xff] 0.0
    %168 = vst [vmem:[%s146 + $0x40] sm:$0xff] 0.0
    %169 = vst [vmem:[%s146 + $0x48] sm:$0xff] 0.0
    %170 = vst [vmem:[%s146 + $0x50] sm:$0xff] 0.0
    %171 = vst [vmem:[%s146 + $0x58] sm:$0xff] 0.0
    %172 = vst [vmem:[%s146 + $0x60] sm:$0xff] 0.0
    %173 = vst [vmem:[%s146 + $0x68] sm:$0xff] 0.0
    %174 = vst [vmem:[%s146 + $0x70] sm:$0xff] 0.0
    %175 = vst [vmem:[%s146 + $0x78] sm:$0xff] 0.0
    %176 = vst [vmem:[%s146 + $0x80] sm:$0xff] 0.0
    %177 = vst [vmem:[%s146 + $0x88] sm:$0xff] 0.0
    %178 = vst [vmem:[%s146 + $0x90] sm:$0xff] 0.0
    %179 = vst [vmem:[%s146 + $0x98] sm:$0xff] 0.0
    %180 = vst [vmem:[%s146 + $0xa0] sm:$0xff] 0.0
    %181 = vst [vmem:[%s146 + $0xa8] sm:$0xff] 0.0
    %182 = vst [vmem:[%s146 + $0xb0] sm:$0xff] 0.0
    %183 = vst [vmem:[%s146 + $0xb8] sm:$0xff] 0.0
    %184 = vst [vmem:[%s146 + $0xc0] sm:$0xff] 0.0
    %185 = vst [vmem:[%s146 + $0xc8] sm:$0xff] 0.0
    %186 = vst [vmem:[%s146 + $0xd0] sm:$0xff] 0.0
    %187 = vst [vmem:[%s146 + $0xd8] sm:$0xff] 0.0
    %188 = vst [vmem:[%s146 + $0xe0] sm:$0xff] 0.0
    %189 = vst [vmem:[%s146 + $0xe8] sm:$0xff] 0.0
    %190 = vst [vmem:[%s146 + $0xf0] sm:$0xff] 0.0
    %191 = vst [vmem:[%s146 + $0xf8] sm:$0xff] 0.0
    %192 = vst [vmem:[%s146 + $0x100] sm:$0xff] 0.0
    %193 = vst [vmem:[%s146 + $0x108] sm:$0xff] 0.0
    %194 = vst [vmem:[%s146 + $0x110] sm:$0xff] 0.0
    %195 = vst [vmem:[%s146 + $0x118] sm:$0xff] 0.0
    %196 = vst [vmem:[%s146 + $0x120] sm:$0xff] 0.0
    %197 = vst [vmem:[%s146 + $0x128] sm:$0xff] 0.0
    %198 = vst [vmem:[%s146 + $0x130] sm:$0xff] 0.0
    %199 = vst [vmem:[%s146 + $0x138] sm:$0xff] 0.0
    %200 = vst [vmem:[%s146 + $0x140] sm:$0xff] 0.0
    %201 = vst [vmem:[%s146 + $0x148] sm:$0xff] 0.0
    %202 = vst [vmem:[%s146 + $0x150] sm:$0xff] 0.0
    %203 = vst [vmem:[%s146 + $0x158] sm:$0xff] 0.0
    %204 = vst [vmem:[%s146 + $0x160] sm:$0xff] 0.0
    %205 = vst [vmem:[%s146 + $0x168] sm:$0xff] 0.0
    %206 = vst [vmem:[%s146 + $0x170] sm:$0xff] 0.0
    %207 = vst [vmem:[%s146 + $0x178] sm:$0xff] 0.0
    %208 = vst [vmem:[%s146 + $0x180] sm:$0xff] 0.0
    %209 = vst [vmem:[%s146 + $0x188] sm:$0xff] 0.0
    %210 = vst [vmem:[%s146 + $0x190] sm:$0xff] 0.0
    %211 = vst [vmem:[%s146 + $0x198] sm:$0xff] 0.0
    %212 = vst [vmem:[%s146 + $0x1a0] sm:$0xff] 0.0
    %213 = vst [vmem:[%s146 + $0x1a8] sm:$0xff] 0.0
    %214 = vst [vmem:[%s146 + $0x1b0] sm:$0xff] 0.0
    %215 = vst [vmem:[%s146 + $0x1b8] sm:$0xff] 0.0
    %216 = vst [vmem:[%s146 + $0x1c0] sm:$0xff] 0.0
    %217 = vst [vmem:[%s146 + $0x1c8] sm:$0xff] 0.0
    %218 = vst [vmem:[%s146 + $0x1d0] sm:$0xff] 0.0
    %219 = vst [vmem:[%s146 + $0x1d8] sm:$0xff] 0.0
    %220 = vst [vmem:[%s146 + $0x1e0] sm:$0xff] 0.0
    %221 = vst [vmem:[%s146 + $0x1e8] sm:$0xff] 0.0
    %222 = vst [vmem:[%s146 + $0x1f0] sm:$0xff] 0.0
    %223 = vst [vmem:[%s146 + $0x1f8] sm:$0xff] 0.0
  $region13: #{upper_triangular_matmul.1} parent=0 // pred_fallthru
    _
  %p224 = scmp.le.s32.totalorder %s153, 1
  // Predicated region
  $region14: #{upper_triangular_matmul.1} parent=0 // pred_check
    %p225 = pneg %p224
  $region15: #{upper_triangular_matmul.1} parent=0 // pred_check_branch
    %227 = sbr.rel (%p225) target = $region17
  $region16: #{upper_triangular_matmul.1} parent=0 // pred_region
    %v228 = vld [vmem:[%s146] sm:$0xff]
    %v229 = vld [vmem:[%s146 + $0x8] sm:$0xff]
    %v230 = vld [vmem:[%s146 + $0x10] sm:$0xff]
    %v231 = vld [vmem:[%s146 + $0x18] sm:$0xff]
    %v232 = vld [vmem:[%s146 + $0x20] sm:$0xff]
    %v233 = vld [vmem:[%s146 + $0x28] sm:$0xff]
    %v234 = vld [vmem:[%s146 + $0x30] sm:$0xff]
    %v235 = vld [vmem:[%s146 + $0x38] sm:$0xff]
    %v236 = vld [vmem:[%s146 + $0x40] sm:$0xff]
    %v237 = vld [vmem:[%s146 + $0x48] sm:$0xff]
    %v238 = vld [vmem:[%s146 + $0x50] sm:$0xff]
    %v239 = vld [vmem:[%s146 + $0x58] sm:$0xff]
    %v240 = vld [vmem:[%s146 + $0x60] sm:$0xff]
    %v241 = vld [vmem:[%s146 + $0x68] sm:$0xff]
    %v242 = vld [vmem:[%s146 + $0x70] sm:$0xff]
    %v243 = vld [vmem:[%s146 + $0x78] sm:$0xff]
    %v244 = vld [vmem:[%s146 + $0x80] sm:$0xff]
    %v245 = vld [vmem:[%s146 + $0x88] sm:$0xff]
    %v246 = vld [vmem:[%s146 + $0x90] sm:$0xff]
    %v247 = vld [vmem:[%s146 + $0x98] sm:$0xff]
    %v248 = vld [vmem:[%s146 + $0xa0] sm:$0xff]
    %v249 = vld [vmem:[%s146 + $0xa8] sm:$0xff]
    %v250 = vld [vmem:[%s146 + $0xb0] sm:$0xff]
    %v251 = vld [vmem:[%s146 + $0xb8] sm:$0xff]
    %v252 = vld [vmem:[%s146 + $0xc0] sm:$0xff]
    %v253 = vld [vmem:[%s146 + $0xc8] sm:$0xff]
    %v254 = vld [vmem:[%s146 + $0xd0] sm:$0xff]
    %v255 = vld [vmem:[%s146 + $0xd8] sm:$0xff]
    %v256 = vld [vmem:[%s146 + $0xe0] sm:$0xff]
    %v257 = vld [vmem:[%s146 + $0xe8] sm:$0xff]
    %v258 = vld [vmem:[%s146 + $0xf0] sm:$0xff]
    %v259 = vld [vmem:[%s146 + $0xf8] sm:$0xff]
    %v260 = vld [vmem:[%s146 + $0x100] sm:$0xff]
    %v261 = vld [vmem:[%s146 + $0x108] sm:$0xff]
    %v262 = vld [vmem:[%s146 + $0x110] sm:$0xff]
    %v263 = vld [vmem:[%s146 + $0x118] sm:$0xff]
    %v264 = vld [vmem:[%s146 + $0x120] sm:$0xff]
    %v265 = vld [vmem:[%s146 + $0x128] sm:$0xff]
    %v266 = vld [vmem:[%s146 + $0x130] sm:$0xff]
    %v267 = vld [vmem:[%s146 + $0x138] sm:$0xff]
    %v268 = vld [vmem:[%s146 + $0x140] sm:$0xff]
    %v269 = vld [vmem:[%s146 + $0x148] sm:$0xff]
    %v270 = vld [vmem:[%s146 + $0x150] sm:$0xff]
    %v271 = vld [vmem:[%s146 + $0x158] sm:$0xff]
    %v272 = vld [vmem:[%s146 + $0x160] sm:$0xff]
    %v273 = vld [vmem:[%s146 + $0x168] sm:$0xff]
    %v274 = vld [vmem:[%s146 + $0x170] sm:$0xff]
    %v275 = vld [vmem:[%s146 + $0x178] sm:$0xff]
    %v276 = vld [vmem:[%s146 + $0x180] sm:$0xff]
    %v277 = vld [vmem:[%s146 + $0x188] sm:$0xff]
    %v278 = vld [vmem:[%s146 + $0x190] sm:$0xff]
    %v279 = vld [vmem:[%s146 + $0x198] sm:$0xff]
    %v280 = vld [vmem:[%s146 + $0x1a0] sm:$0xff]
    %v281 = vld [vmem:[%s146 + $0x1a8] sm:$0xff]
    %v282 = vld [vmem:[%s146 + $0x1b0] sm:$0xff]
    %v283 = vld [vmem:[%s146 + $0x1b8] sm:$0xff]
    %v284 = vld [vmem:[%s146 + $0x1c0] sm:$0xff]
    %v285 = vld [vmem:[%s146 + $0x1c8] sm:$0xff]
    %v286 = vld [vmem:[%s146 + $0x1d0] sm:$0xff]
    %v287 = vld [vmem:[%s146 + $0x1d8] sm:$0xff]
    %v288 = vld [vmem:[%s146 + $0x1e0] sm:$0xff]
    %v289 = vld [vmem:[%s146 + $0x1e8] sm:$0xff]
    %v290 = vld [vmem:[%s146 + $0x1f0] sm:$0xff]
    %v291 = vld [vmem:[%s146 + $0x1f8] sm:$0xff]
    %v292 = vld [vmem:[%s110] sm:$0xff]
    %v293 = vld [vmem:[%s110 + $0x8] sm:$0xff]
    %v294 = vld [vmem:[%s110 + $0x10] sm:$0xff]
    %v295 = vld [vmem:[%s110 + $0x18] sm:$0xff]
    %v296 = vld [vmem:[%s110 + $0x20] sm:$0xff]
    %v297 = vld [vmem:[%s110 + $0x28] sm:$0xff]
    %v298 = vld [vmem:[%s110 + $0x30] sm:$0xff]
    %v299 = vld [vmem:[%s110 + $0x38] sm:$0xff]
    %v300 = vld [vmem:[%s110 + $0x40] sm:$0xff]
    %v301 = vld [vmem:[%s110 + $0x48] sm:$0xff]
    %v302 = vld [vmem:[%s110 + $0x50] sm:$0xff]
    %v303 = vld [vmem:[%s110 + $0x58] sm:$0xff]
    %v304 = vld [vmem:[%s110 + $0x60] sm:$0xff]
    %v305 = vld [vmem:[%s110 + $0x68] sm:$0xff]
    %v306 = vld [vmem:[%s110 + $0x70] sm:$0xff]
    %v307 = vld [vmem:[%s110 + $0x78] sm:$0xff]
    %v308 = vld [vmem:[%s110 + $0x80] sm:$0xff]
    %v309 = vld [vmem:[%s110 + $0x88] sm:$0xff]
    %v310 = vld [vmem:[%s110 + $0x90] sm:$0xff]
    %v311 = vld [vmem:[%s110 + $0x98] sm:$0xff]
    %v312 = vld [vmem:[%s110 + $0xa0] sm:$0xff]
    %v313 = vld [vmem:[%s110 + $0xa8] sm:$0xff]
    %v314 = vld [vmem:[%s110 + $0xb0] sm:$0xff]
    %v315 = vld [vmem:[%s110 + $0xb8] sm:$0xff]
    %v316 = vld [vmem:[%s110 + $0xc0] sm:$0xff]
    %v317 = vld [vmem:[%s110 + $0xc8] sm:$0xff]
    %v318 = vld [vmem:[%s110 + $0xd0] sm:$0xff]
    %v319 = vld [vmem:[%s110 + $0xd8] sm:$0xff]
    %v320 = vld [vmem:[%s110 + $0xe0] sm:$0xff]
    %v321 = vld [vmem:[%s110 + $0xe8] sm:$0xff]
    %v322 = vld [vmem:[%s110 + $0xf0] sm:$0xff]
    %v323 = vld [vmem:[%s110 + $0xf8] sm:$0xff]
    %v324 = vld [vmem:[%s110 + $0x100] sm:$0xff]
    %v325 = vld [vmem:[%s110 + $0x108] sm:$0xff]
    %v326 = vld [vmem:[%s110 + $0x110] sm:$0xff]
    %v327 = vld [vmem:[%s110 + $0x118] sm:$0xff]
    %v328 = vld [vmem:[%s110 + $0x120] sm:$0xff]
    %v329 = vld [vmem:[%s110 + $0x128] sm:$0xff]
    %v330 = vld [vmem:[%s110 + $0x130] sm:$0xff]
    %v331 = vld [vmem:[%s110 + $0x138] sm:$0xff]
    %v332 = vld [vmem:[%s110 + $0x140] sm:$0xff]
    %v333 = vld [vmem:[%s110 + $0x148] sm:$0xff]
    %v334 = vld [vmem:[%s110 + $0x150] sm:$0xff]
    %v335 = vld [vmem:[%s110 + $0x158] sm:$0xff]
    %v336 = vld [vmem:[%s110 + $0x160] sm:$0xff]
    %v337 = vld [vmem:[%s110 + $0x168] sm:$0xff]
    %v338 = vld [vmem:[%s110 + $0x170] sm:$0xff]
    %v339 = vld [vmem:[%s110 + $0x178] sm:$0xff]
    %v340 = vld [vmem:[%s110 + $0x180] sm:$0xff]
    %v341 = vld [vmem:[%s110 + $0x188] sm:$0xff]
    %v342 = vld [vmem:[%s110 + $0x190] sm:$0xff]
    %v343 = vld [vmem:[%s110 + $0x198] sm:$0xff]
    %v344 = vld [vmem:[%s110 + $0x1a0] sm:$0xff]
    %v345 = vld [vmem:[%s110 + $0x1a8] sm:$0xff]
    %v346 = vld [vmem:[%s110 + $0x1b0] sm:$0xff]
    %v347 = vld [vmem:[%s110 + $0x1b8] sm:$0xff]
    %v348 = vld [vmem:[%s110 + $0x1c0] sm:$0xff]
    %v349 = vld [vmem:[%s110 + $0x1c8] sm:$0xff]
    %v350 = vld [vmem:[%s110 + $0x1d0] sm:$0xff]
    %v351 = vld [vmem:[%s110 + $0x1d8] sm:$0xff]
    %v352 = vld [vmem:[%s110 + $0x1e0] sm:$0xff]
    %v353 = vld [vmem:[%s110 + $0x1e8] sm:$0xff]
    %v354 = vld [vmem:[%s110 + $0x1f0] sm:$0xff]
    %v355 = vld [vmem:[%s110 + $0x1f8] sm:$0xff]
    %v356 = vld [vmem:[%s128] sm:$0xff]
    %v357 = vld [vmem:[%s128 + $0x8] sm:$0xff]
    %v358 = vld [vmem:[%s128 + $0x10] sm:$0xff]
    %v359 = vld [vmem:[%s128 + $0x18] sm:$0xff]
    %v360 = vld [vmem:[%s128 + $0x20] sm:$0xff]
    %v361 = vld [vmem:[%s128 + $0x28] sm:$0xff]
    %v362 = vld [vmem:[%s128 + $0x30] sm:$0xff]
    %v363 = vld [vmem:[%s128 + $0x38] sm:$0xff]
    %v364 = vld [vmem:[%s128 + $0x40] sm:$0xff]
    %v365 = vld [vmem:[%s128 + $0x48] sm:$0xff]
    %v366 = vld [vmem:[%s128 + $0x50] sm:$0xff]
    %v367 = vld [vmem:[%s128 + $0x58] sm:$0xff]
    %v368 = vld [vmem:[%s128 + $0x60] sm:$0xff]
    %v369 = vld [vmem:[%s128 + $0x68] sm:$0xff]
    %v370 = vld [vmem:[%s128 + $0x70] sm:$0xff]
    %v371 = vld [vmem:[%s128 + $0x78] sm:$0xff]
    %v372 = vld [vmem:[%s128 + $0x80] sm:$0xff]
    %v373 = vld [vmem:[%s128 + $0x88] sm:$0xff]
    %v374 = vld [vmem:[%s128 + $0x90] sm:$0xff]
    %v375 = vld [vmem:[%s128 + $0x98] sm:$0xff]
    %v376 = vld [vmem:[%s128 + $0xa0] sm:$0xff]
    %v377 = vld [vmem:[%s128 + $0xa8] sm:$0xff]
    %v378 = vld [vmem:[%s128 + $0xb0] sm:$0xff]
    %v379 = vld [vmem:[%s128 + $0xb8] sm:$0xff]
    %v380 = vld [vmem:[%s128 + $0xc0] sm:$0xff]
    %v381 = vld [vmem:[%s128 + $0xc8] sm:$0xff]
    %v382 = vld [vmem:[%s128 + $0xd0] sm:$0xff]
    %v383 = vld [vmem:[%s128 + $0xd8] sm:$0xff]
    %v384 = vld [vmem:[%s128 + $0xe0] sm:$0xff]
    %v385 = vld [vmem:[%s128 + $0xe8] sm:$0xff]
    %v386 = vld [vmem:[%s128 + $0xf0] sm:$0xff]
    %v387 = vld [vmem:[%s128 + $0xf8] sm:$0xff]
    %v388 = vld [vmem:[%s128 + $0x100] sm:$0xff]
    %v389 = vld [vmem:[%s128 + $0x108] sm:$0xff]
    %v390 = vld [vmem:[%s128 + $0x110] sm:$0xff]
    %v391 = vld [vmem:[%s128 + $0x118] sm:$0xff]
    %v392 = vld [vmem:[%s128 + $0x120] sm:$0xff]
    %v393 = vld [vmem:[%s128 + $0x128] sm:$0xff]
    %v394 = vld [vmem:[%s128 + $0x130] sm:$0xff]
    %v395 = vld [vmem:[%s128 + $0x138] sm:$0xff]
    %v396 = vld [vmem:[%s128 + $0x140] sm:$0xff]
    %v397 = vld [vmem:[%s128 + $0x148] sm:$0xff]
    %v398 = vld [vmem:[%s128 + $0x150] sm:$0xff]
    %v399 = vld [vmem:[%s128 + $0x158] sm:$0xff]
    %v400 = vld [vmem:[%s128 + $0x160] sm:$0xff]
    %v401 = vld [vmem:[%s128 + $0x168] sm:$0xff]
    %v402 = vld [vmem:[%s128 + $0x170] sm:$0xff]
    %v403 = vld [vmem:[%s128 + $0x178] sm:$0xff]
    %v404 = vld [vmem:[%s128 + $0x180] sm:$0xff]
    %v405 = vld [vmem:[%s128 + $0x188] sm:$0xff]
    %v406 = vld [vmem:[%s128 + $0x190] sm:$0xff]
    %v407 = vld [vmem:[%s128 + $0x198] sm:$0xff]
    %v408 = vld [vmem:[%s128 + $0x1a0] sm:$0xff]
    %v409 = vld [vmem:[%s128 + $0x1a8] sm:$0xff]
    %v410 = vld [vmem:[%s128 + $0x1b0] sm:$0xff]
    %v411 = vld [vmem:[%s128 + $0x1b8] sm:$0xff]
    %v412 = vld [vmem:[%s128 + $0x1c0] sm:$0xff]
    %v413 = vld [vmem:[%s128 + $0x1c8] sm:$0xff]
    %v414 = vld [vmem:[%s128 + $0x1d0] sm:$0xff]
    %v415 = vld [vmem:[%s128 + $0x1d8] sm:$0xff]
    %v416 = vld [vmem:[%s128 + $0x1e0] sm:$0xff]
    %v417 = vld [vmem:[%s128 + $0x1e8] sm:$0xff]
    %v418 = vld [vmem:[%s128 + $0x1f0] sm:$0xff]
    %v419 = vld [vmem:[%s128 + $0x1f8] sm:$0xff]
    %420 = vmatprep.subr.mxu0 %v387
    %421 = vmatpush1.msra.mxu0 %v386
    %422 = vmatprep.subr.mxu0 %v385
    %423 = vmatpush1.msra.mxu0 %v384
    %424 = vmatprep.subr.mxu0 %v383
    %425 = vmatpush1.msra.mxu0 %v382
    %426 = vmatprep.subr.mxu0 %v381
    %427 = vmatpush1.msra.mxu0 %v380
    %428 = vmatprep.subr.mxu0 %v379
    %429 = vmatpush1.msra.mxu0 %v378
    %430 = vmatprep.subr.mxu0 %v377
    %431 = vmatpush1.msra.mxu0 %v376
    %432 = vmatprep.subr.mxu0 %v375
    %433 = vmatpush1.msra.mxu0 %v374
    %434 = vmatprep.subr.mxu0 %v373
    %435 = vmatpush1.msra.mxu0 %v372
    %436 = vmatprep.subr.mxu0 %v371
    %437 = vmatpush1.msra.mxu0 %v370
    %438 = vmatprep.subr.mxu0 %v369
    %439 = vmatpush1.msra.mxu0 %v368
    %440 = vmatprep.subr.mxu0 %v367
    %441 = vmatpush1.msra.mxu0 %v366
    %442 = vmatprep.subr.mxu0 %v365
    %443 = vmatpush1.msra.mxu0 %v364
    %444 = vmatprep.subr.mxu0 %v363
    %445 = vmatpush1.msra.mxu0 %v362
    %446 = vmatprep.subr.mxu0 %v361
    %447 = vmatpush1.msra.mxu0 %v360
    %448 = vmatprep.subr.mxu0 %v359
    %449 = vmatpush1.msra.mxu0 %v358
    %450 = vmatprep.subr.mxu0 %v357
    %451 = vmatpush1.msra.mxu0 %v356
    %452 = vmatprep.subr.mxu0 %v419
    %453 = vmatpush2.msra.mxu0 %v418
    %454 = vmatprep.subr.mxu0 %v417
    %455 = vmatpush2.msra.mxu0 %v416
    %456 = vmatprep.subr.mxu0 %v415
    %457 = vmatpush2.msra.mxu0 %v414
    %458 = vmatprep.subr.mxu0 %v413
    %459 = vmatpush2.msra.mxu0 %v412
    %460 = vmatprep.subr.mxu0 %v411
    %461 = vmatpush2.msra.mxu0 %v410
    %462 = vmatprep.subr.mxu0 %v409
    %463 = vmatpush2.msra.mxu0 %v408
    %464 = vmatprep.subr.mxu0 %v407
    %465 = vmatpush2.msra.mxu0 %v406
    %466 = vmatprep.subr.mxu0 %v405
    %467 = vmatpush2.msra.mxu0 %v404
    %468 = vmatprep.subr.mxu0 %v403
    %469 = vmatpush2.msra.mxu0 %v402
    %470 = vmatprep.subr.mxu0 %v401
    %471 = vmatpush2.msra.mxu0 %v400
    %472 = vmatprep.subr.mxu0 %v399
    %473 = vmatpush2.msra.mxu0 %v398
    %474 = vmatprep.subr.mxu0 %v397
    %475 = vmatpush2.msra.mxu0 %v396
    %476 = vmatprep.subr.mxu0 %v395
    %477 = vmatpush2.msra.mxu0 %v394
    %478 = vmatprep.subr.mxu0 %v393
    %479 = vmatpush2.msra.mxu0 %v392
    %480 = vmatprep.subr.mxu0 %v391
    %481 = vmatpush2.msra.mxu0 %v390
    %482 = vmatprep.subr.mxu0 %v389
    %483 = vmatpush2.msra.mxu0 %v388
    %484 = vmatprep.mubr.f32.mxu0 %v293
    %485 = vmatmul.mubr.f32.gmra.mxu0 %v292
    %v486 = vpop.f32.mrf.mxu0
    %v487 = vadd.f32 0.0, %v486
    %v488 = vpop.f32.mrf.mxu0
    %v489 = vadd.f32 0.0, %v488
    %490 = vmatprep.mubr.f32.mxu0 %v295
    %491 = vmatmul.mubr.f32.gmra.mxu0 %v294
    %v492 = vpop.f32.mrf.mxu0
    %v493 = vadd.f32 0.0, %v492
    %v494 = vpop.f32.mrf.mxu0
    %v495 = vadd.f32 0.0, %v494
    %496 = vmatprep.mubr.f32.mxu0 %v297
    %497 = vmatmul.mubr.f32.gmra.mxu0 %v296
    %v498 = vpop.f32.mrf.mxu0
    %v499 = vadd.f32 0.0, %v498
    %v500 = vpop.f32.mrf.mxu0
    %v501 = vadd.f32 0.0, %v500
    %502 = vmatprep.mubr.f32.mxu0 %v299
    %503 = vmatmul.mubr.f32.gmra.mxu0 %v298
    %v504 = vpop.f32.mrf.mxu0
    %v505 = vadd.f32 0.0, %v504
    %v506 = vpop.f32.mrf.mxu0
    %v507 = vadd.f32 0.0, %v506
    %508 = vmatprep.mubr.f32.mxu0 %v301
    %509 = vmatmul.mubr.f32.gmra.mxu0 %v300
    %v510 = vpop.f32.mrf.mxu0
    %v511 = vadd.f32 0.0, %v510
    %v512 = vpop.f32.mrf.mxu0
    %v513 = vadd.f32 0.0, %v512
    %514 = vmatprep.mubr.f32.mxu0 %v303
    %515 = vmatmul.mubr.f32.gmra.mxu0 %v302
    %v516 = vpop.f32.mrf.mxu0
    %v517 = vadd.f32 0.0, %v516
    %v518 = vpop.f32.mrf.mxu0
    %v519 = vadd.f32 0.0, %v518
    %520 = vmatprep.mubr.f32.mxu0 %v305
    %521 = vmatmul.mubr.f32.gmra.mxu0 %v304
    %v522 = vpop.f32.mrf.mxu0
    %v523 = vadd.f32 0.0, %v522
    %v524 = vpop.f32.mrf.mxu0
    %v525 = vadd.f32 0.0, %v524
    %526 = vmatprep.mubr.f32.mxu0 %v307
    %527 = vmatmul.mubr.f32.gmra.mxu0 %v306
    %v528 = vpop.f32.mrf.mxu0
    %v529 = vadd.f32 0.0, %v528
    %v530 = vpop.f32.mrf.mxu0
    %v531 = vadd.f32 0.0, %v530
    %532 = vmatprep.mubr.f32.mxu0 %v309
    %533 = vmatmul.mubr.f32.gmra.mxu0 %v308
    %v534 = vpop.f32.mrf.mxu0
    %v535 = vadd.f32 0.0, %v534
    %v536 = vpop.f32.mrf.mxu0
    %v537 = vadd.f32 0.0, %v536
    %538 = vmatprep.mubr.f32.mxu0 %v311
    %539 = vmatmul.mubr.f32.gmra.mxu0 %v310
    %v540 = vpop.f32.mrf.mxu0
    %v541 = vadd.f32 0.0, %v540
    %v542 = vpop.f32.mrf.mxu0
    %v543 = vadd.f32 0.0, %v542
    %544 = vmatprep.mubr.f32.mxu0 %v313
    %545 = vmatmul.mubr.f32.gmra.mxu0 %v312
    %v546 = vpop.f32.mrf.mxu0
    %v547 = vadd.f32 0.0, %v546
    %v548 = vpop.f32.mrf.mxu0
    %v549 = vadd.f32 0.0, %v548
    %550 = vmatprep.mubr.f32.mxu0 %v315
    %551 = vmatmul.mubr.f32.gmra.mxu0 %v314
    %v552 = vpop.f32.mrf.mxu0
    %v553 = vadd.f32 0.0, %v552
    %v554 = vpop.f32.mrf.mxu0
    %v555 = vadd.f32 0.0, %v554
    %556 = vmatprep.mubr.f32.mxu0 %v317
    %557 = vmatmul.mubr.f32.gmra.mxu0 %v316
    %v558 = vpop.f32.mrf.mxu0
    %v559 = vadd.f32 0.0, %v558
    %v560 = vpop.f32.mrf.mxu0
    %v561 = vadd.f32 0.0, %v560
    %562 = vmatprep.mubr.f32.mxu0 %v319
    %563 = vmatmul.mubr.f32.gmra.mxu0 %v318
    %v564 = vpop.f32.mrf.mxu0
    %v565 = vadd.f32 0.0, %v564
    %v566 = vpop.f32.mrf.mxu0
    %v567 = vadd.f32 0.0, %v566
    %568 = vmatprep.mubr.f32.mxu0 %v321
    %569 = vmatmul.mubr.f32.gmra.mxu0 %v320
    %v570 = vpop.f32.mrf.mxu0
    %v571 = vadd.f32 0.0, %v570
    %v572 = vpop.f32.mrf.mxu0
    %v573 = vadd.f32 0.0, %v572
    %574 = vmatprep.mubr.f32.mxu0 %v323
    %575 = vmatmul.mubr.f32.gmra.mxu0 %v322
    %v576 = vpop.f32.mrf.mxu0
    %v577 = vadd.f32 0.0, %v576
    %v578 = vpop.f32.mrf.mxu0
    %v579 = vadd.f32 0.0, %v578
    %580 = vmatprep.mubr.f32.mxu0 %v325
    %581 = vmatmul.mubr.f32.gmra.mxu0 %v324
    %v582 = vpop.f32.mrf.mxu0
    %v583 = vadd.f32 0.0, %v582
    %v584 = vpop.f32.mrf.mxu0
    %v585 = vadd.f32 0.0, %v584
    %586 = vmatprep.mubr.f32.mxu0 %v327
    %587 = vmatmul.mubr.f32.gmra.mxu0 %v326
    %v588 = vpop.f32.mrf.mxu0
    %v589 = vadd.f32 0.0, %v588
    %v590 = vpop.f32.mrf.mxu0
    %v591 = vadd.f32 0.0, %v590
    %592 = vmatprep.mubr.f32.mxu0 %v329
    %593 = vmatmul.mubr.f32.gmra.mxu0 %v328
    %v594 = vpop.f32.mrf.mxu0
    %v595 = vadd.f32 0.0, %v594
    %v596 = vpop.f32.mrf.mxu0
    %v597 = vadd.f32 0.0, %v596
    %598 = vmatprep.mubr.f32.mxu0 %v331
    %599 = vmatmul.mubr.f32.gmra.mxu0 %v330
    %v600 = vpop.f32.mrf.mxu0
    %v601 = vadd.f32 0.0, %v600
    %v602 = vpop.f32.mrf.mxu0
    %v603 = vadd.f32 0.0, %v602
    %604 = vmatprep.mubr.f32.mxu0 %v333
    %605 = vmatmul.mubr.f32.gmra.mxu0 %v332
    %v606 = vpop.f32.mrf.mxu0
    %v607 = vadd.f32 0.0, %v606
    %v608 = vpop.f32.mrf.mxu0
    %v609 = vadd.f32 0.0, %v608
    %610 = vmatprep.mubr.f32.mxu0 %v335
    %611 = vmatmul.mubr.f32.gmra.mxu0 %v334
    %v612 = vpop.f32.mrf.mxu0
    %v613 = vadd.f32 0.0, %v612
    %v614 = vpop.f32.mrf.mxu0
    %v615 = vadd.f32 0.0, %v614
    %616 = vmatprep.mubr.f32.mxu0 %v337
    %617 = vmatmul.mubr.f32.gmra.mxu0 %v336
    %v618 = vpop.f32.mrf.mxu0
    %v619 = vadd.f32 0.0, %v618
    %v620 = vpop.f32.mrf.mxu0
    %v621 = vadd.f32 0.0, %v620
    %622 = vmatprep.mubr.f32.mxu0 %v339
    %623 = vmatmul.mubr.f32.gmra.mxu0 %v338
    %v624 = vpop.f32.mrf.mxu0
    %v625 = vadd.f32 0.0, %v624
    %v626 = vpop.f32.mrf.mxu0
    %v627 = vadd.f32 0.0, %v626
    %628 = vmatprep.mubr.f32.mxu0 %v341
    %629 = vmatmul.mubr.f32.gmra.mxu0 %v340
    %v630 = vpop.f32.mrf.mxu0
    %v631 = vadd.f32 0.0, %v630
    %v632 = vpop.f32.mrf.mxu0
    %v633 = vadd.f32 0.0, %v632
    %634 = vmatprep.mubr.f32.mxu0 %v343
    %635 = vmatmul.mubr.f32.gmra.mxu0 %v342
    %v636 = vpop.f32.mrf.mxu0
    %v637 = vadd.f32 0.0, %v636
    %v638 = vpop.f32.mrf.mxu0
    %v639 = vadd.f32 0.0, %v638
    %640 = vmatprep.mubr.f32.mxu0 %v345
    %641 = vmatmul.mubr.f32.gmra.mxu0 %v344
    %v642 = vpop.f32.mrf.mxu0
    %v643 = vadd.f32 0.0, %v642
    %v644 = vpop.f32.mrf.mxu0
    %v645 = vadd.f32 0.0, %v644
    %646 = vmatprep.mubr.f32.mxu0 %v347
    %647 = vmatmul.mubr.f32.gmra.mxu0 %v346
    %v648 = vpop.f32.mrf.mxu0
    %v649 = vadd.f32 0.0, %v648
    %v650 = vpop.f32.mrf.mxu0
    %v651 = vadd.f32 0.0, %v650
    %652 = vmatprep.mubr.f32.mxu0 %v349
    %653 = vmatmul.mubr.f32.gmra.mxu0 %v348
    %v654 = vpop.f32.mrf.mxu0
    %v655 = vadd.f32 0.0, %v654
    %v656 = vpop.f32.mrf.mxu0
    %v657 = vadd.f32 0.0, %v656
    %658 = vmatprep.mubr.f32.mxu0 %v351
    %659 = vmatmul.mubr.f32.gmra.mxu0 %v350
    %v660 = vpop.f32.mrf.mxu0
    %v661 = vadd.f32 0.0, %v660
    %v662 = vpop.f32.mrf.mxu0
    %v663 = vadd.f32 0.0, %v662
    %664 = vmatprep.mubr.f32.mxu0 %v353
    %665 = vmatmul.mubr.f32.gmra.mxu0 %v352
    %v666 = vpop.f32.mrf.mxu0
    %v667 = vadd.f32 0.0, %v666
    %v668 = vpop.f32.mrf.mxu0
    %v669 = vadd.f32 0.0, %v668
    %670 = vmatprep.mubr.f32.mxu0 %v355
    %671 = vmatmul.mubr.f32.gmra.mxu0 %v354
    %v672 = vpop.f32.mrf.mxu0
    %v673 = vadd.f32 0.0, %v672
    %v674 = vpop.f32.mrf.mxu0
    %v675 = vadd.f32 0.0, %v674
    %676 = vdwg.mxu0
    %v677 = vadd.f32 %v228, %v487
    %v678 = vadd.f32 %v229, %v489
    %v679 = vadd.f32 %v230, %v493
    %v680 = vadd.f32 %v231, %v495
    %v681 = vadd.f32 %v232, %v499
    %v682 = vadd.f32 %v233, %v501
    %v683 = vadd.f32 %v234, %v505
    %v684 = vadd.f32 %v235, %v507
    %v685 = vadd.f32 %v236, %v511
    %v686 = vadd.f32 %v237, %v513
    %v687 = vadd.f32 %v238, %v517
    %v688 = vadd.f32 %v239, %v519
    %v689 = vadd.f32 %v240, %v523
    %v690 = vadd.f32 %v241, %v525
    %v691 = vadd.f32 %v242, %v529
    %v692 = vadd.f32 %v243, %v531
    %v693 = vadd.f32 %v244, %v535
    %v694 = vadd.f32 %v245, %v537
    %v695 = vadd.f32 %v246, %v541
    %v696 = vadd.f32 %v247, %v543
    %v697 = vadd.f32 %v248, %v547
    %v698 = vadd.f32 %v249, %v549
    %v699 = vadd.f32 %v250, %v553
    %v700 = vadd.f32 %v251, %v555
    %v701 = vadd.f32 %v252, %v559
    %v702 = vadd.f32 %v253, %v561
    %v703 = vadd.f32 %v254, %v565
    %v704 = vadd.f32 %v255, %v567
    %v705 = vadd.f32 %v256, %v571
    %v706 = vadd.f32 %v257, %v573
    %v707 = vadd.f32 %v258, %v577
    %v708 = vadd.f32 %v259, %v579
    %v709 = vadd.f32 %v260, %v583
    %v710 = vadd.f32 %v261, %v585
    %v711 = vadd.f32 %v262, %v589
    %v712 = vadd.f32 %v263, %v591
    %v713 = vadd.f32 %v264, %v595
    %v714 = vadd.f32 %v265, %v597
    %v715 = vadd.f32 %v266, %v601
    %v716 = vadd.f32 %v267, %v603
    %v717 = vadd.f32 %v268, %v607
    %v718 = vadd.f32 %v269, %v609
    %v719 = vadd.f32 %v270, %v613
    %v720 = vadd.f32 %v271, %v615
    %v721 = vadd.f32 %v272, %v619
    %v722 = vadd.f32 %v273, %v621
    %v723 = vadd.f32 %v274, %v625
    %v724 = vadd.f32 %v275, %v627
    %v725 = vadd.f32 %v276, %v631
    %v726 = vadd.f32 %v277, %v633
    %v727 = vadd.f32 %v278, %v637
    %v728 = vadd.f32 %v279, %v639
    %v729 = vadd.f32 %v280, %v643
    %v730 = vadd.f32 %v281, %v645
    %v731 = vadd.f32 %v282, %v649
    %v732 = vadd.f32 %v283, %v651
    %v733 = vadd.f32 %v284, %v655
    %v734 = vadd.f32 %v285, %v657
    %v735 = vadd.f32 %v286, %v661
    %v736 = vadd.f32 %v287, %v663
    %v737 = vadd.f32 %v288, %v667
    %v738 = vadd.f32 %v289, %v669
    %v739 = vadd.f32 %v290, %v673
    %v740 = vadd.f32 %v291, %v675
    %741 = vst [vmem:[%s146] sm:$0xff] %v677
    %742 = vst [vmem:[%s146 + $0x8] sm:$0xff] %v678
    %743 = vst [vmem:[%s146 + $0x10] sm:$0xff] %v679
    %744 = vst [vmem:[%s146 + $0x18] sm:$0xff] %v680
    %745 = vst [vmem:[%s146 + $0x20] sm:$0xff] %v681
    %746 = vst [vmem:[%s146 + $0x28] sm:$0xff] %v682
    %747 = vst [vmem:[%s146 + $0x30] sm:$0xff] %v683
    %748 = vst [vmem:[%s146 + $0x38] sm:$0xff] %v684
    %749 = vst [vmem:[%s146 + $0x40] sm:$0xff] %v685
    %750 = vst [vmem:[%s146 + $0x48] sm:$0xff] %v686
    %751 = vst [vmem:[%s146 + $0x50] sm:$0xff] %v687
    %752 = vst [vmem:[%s146 + $0x58] sm:$0xff] %v688
    %753 = vst [vmem:[%s146 + $0x60] sm:$0xff] %v689
    %754 = vst [vmem:[%s146 + $0x68] sm:$0xff] %v690
    %755 = vst [vmem:[%s146 + $0x70] sm:$0xff] %v691
    %756 = vst [vmem:[%s146 + $0x78] sm:$0xff] %v692
    %757 = vst [vmem:[%s146 + $0x80] sm:$0xff] %v693
    %758 = vst [vmem:[%s146 + $0x88] sm:$0xff] %v694
    %759 = vst [vmem:[%s146 + $0x90] sm:$0xff] %v695
    %760 = vst [vmem:[%s146 + $0x98] sm:$0xff] %v696
    %761 = vst [vmem:[%s146 + $0xa0] sm:$0xff] %v697
    %762 = vst [vmem:[%s146 + $0xa8] sm:$0xff] %v698
    %763 = vst [vmem:[%s146 + $0xb0] sm:$0xff] %v699
    %764 = vst [vmem:[%s146 + $0xb8] sm:$0xff] %v700
    %765 = vst [vmem:[%s146 + $0xc0] sm:$0xff] %v701
    %766 = vst [vmem:[%s146 + $0xc8] sm:$0xff] %v702
    %767 = vst [vmem:[%s146 + $0xd0] sm:$0xff] %v703
    %768 = vst [vmem:[%s146 + $0xd8] sm:$0xff] %v704
    %769 = vst [vmem:[%s146 + $0xe0] sm:$0xff] %v705
    %770 = vst [vmem:[%s146 + $0xe8] sm:$0xff] %v706
    %771 = vst [vmem:[%s146 + $0xf0] sm:$0xff] %v707
    %772 = vst [vmem:[%s146 + $0xf8] sm:$0xff] %v708
    %773 = vst [vmem:[%s146 + $0x100] sm:$0xff] %v709
    %774 = vst [vmem:[%s146 + $0x108] sm:$0xff] %v710
    %775 = vst [vmem:[%s146 + $0x110] sm:$0xff] %v711
    %776 = vst [vmem:[%s146 + $0x118] sm:$0xff] %v712
    %777 = vst [vmem:[%s146 + $0x120] sm:$0xff] %v713
    %778 = vst [vmem:[%s146 + $0x128] sm:$0xff] %v714
    %779 = vst [vmem:[%s146 + $0x130] sm:$0xff] %v715
    %780 = vst [vmem:[%s146 + $0x138] sm:$0xff] %v716
    %781 = vst [vmem:[%s146 + $0x140] sm:$0xff] %v717
    %782 = vst [vmem:[%s146 + $0x148] sm:$0xff] %v718
    %783 = vst [vmem:[%s146 + $0x150] sm:$0xff] %v719
    %784 = vst [vmem:[%s146 + $0x158] sm:$0xff] %v720
    %785 = vst [vmem:[%s146 + $0x160] sm:$0xff] %v721
    %786 = vst [vmem:[%s146 + $0x168] sm:$0xff] %v722
    %787 = vst [vmem:[%s146 + $0x170] sm:$0xff] %v723
    %788 = vst [vmem:[%s146 + $0x178] sm:$0xff] %v724
    %789 = vst [vmem:[%s146 + $0x180] sm:$0xff] %v725
    %790 = vst [vmem:[%s146 + $0x188] sm:$0xff] %v726
    %791 = vst [vmem:[%s146 + $0x190] sm:$0xff] %v727
    %792 = vst [vmem:[%s146 + $0x198] sm:$0xff] %v728
    %793 = vst [vmem:[%s146 + $0x1a0] sm:$0xff] %v729
    %794 = vst [vmem:[%s146 + $0x1a8] sm:$0xff] %v730
    %795 = vst [vmem:[%s146 + $0x1b0] sm:$0xff] %v731
    %796 = vst [vmem:[%s146 + $0x1b8] sm:$0xff] %v732
    %797 = vst [vmem:[%s146 + $0x1c0] sm:$0xff] %v733
    %798 = vst [vmem:[%s146 + $0x1c8] sm:$0xff] %v734
    %799 = vst [vmem:[%s146 + $0x1d0] sm:$0xff] %v735
    %800 = vst [vmem:[%s146 + $0x1d8] sm:$0xff] %v736
    %801 = vst [vmem:[%s146 + $0x1e0] sm:$0xff] %v737
    %802 = vst [vmem:[%s146 + $0x1e8] sm:$0xff] %v738
    %803 = vst [vmem:[%s146 + $0x1f0] sm:$0xff] %v739
    %804 = vst [vmem:[%s146 + $0x1f8] sm:$0xff] %v740
  $region17: #{upper_triangular_matmul.1} parent=0 // pred_fallthru
    _
  %s805 = sadd.s32 0, 0
  %s806 = sld [smem:[#allocation3 + %s805]]
  %s807 = sld [smem:[#allocation4 + %s805]]
  %s808 = smul.u32 32, %s806
  %s809 = smul.u32 2, %s807
  %p810 = scmp.lt.s32.totalorder %s808, 31
  %s811 = scalar_select %p810, %s808, 31
  %p812 = scmp.lt.s32.totalorder %s809, 1
  %s813 = scalar_select %p812, %s809, 1
  %s814 = smul.addr %s811, 2
  %s815 = sadd.s32 %s813, %s814
  %s816 = smul.addr %s815, 8
  %s817 = scalar_lea.vmem %s8, %s816
  // Predicated region
  $region18: #{upper_triangular_matmul.1} parent=0 // pred_check
    _
  $region19: #{upper_triangular_matmul.1} parent=0 // pred_check_branch
    %819 = sbr.rel (0) target = $region21
  $region20: #{upper_triangular_matmul.1} parent=0 // pred_region
    %s820 = sadd.s32 0, 0
    %s821 = sld [smem:[#allocation3 + %s820]]
    %s822 = sld [smem:[#allocation4 + %s820]]
    %s823 = smul.u32 32, %s821
    %s824 = smul.u32 2, %s822
  $region21: #{upper_triangular_matmul.1} parent=0 // pred_fallthru
    _
  // Predicated region
  $region22: #{upper_triangular_matmul.1} parent=0 // pred_check
    _
  $region23: #{upper_triangular_matmul.1} parent=0 // pred_check_branch
    %826 = sbr.rel (0) target = $region25
  $region24: #{upper_triangular_matmul.1} parent=0 // pred_region
    %s827 = sadd.s32 0, 0
    %s828 = sld [smem:[#allocation3 + %s827]]
    %s829 = sld [smem:[#allocation4 + %s827]]
    %s830 = smul.u32 32, %s828
    %s831 = smul.u32 2, %s829
    %p832 = scmp.lt.s32.totalorder %s830, 31
    %s833 = scalar_select %p832, %s830, 31
    %p834 = scmp.lt.s32.totalorder %s831, 1
    %s835 = scalar_select %p834, %s831, 1
    %s836 = smul.addr %s833, 2
    %s837 = sadd.s32 %s835, %s836
    %s838 = smul.addr %s837, 8
    %s839 = scalar_lea.vmem %s8, %s838
  $region25: #{upper_triangular_matmul.1} parent=0 // pred_fallthru
    _

</llo_original>
